<compile_context>
chip_gen: v6e
topology: v6e:2x2x1
jax: 0.10.0
libtpu: 0.0.40
codegen_flags: <defaults>
</compile_context>

<pallas_src>
import jax
import jax.numpy as jnp
from jax import lax
from jax.experimental import pallas as pl
from jax.experimental.pallas import tpu as pltpu


def _round_up(x, m):
    return (x + m - 1) // m * m


def _fused_matmul_kernel(x_ref, w_ref, b_ref, o_ref):
    """One row-tile per grid step.

    x_ref: (TM, KCp)   im2col'd input rows (lane-padded)
    w_ref: (KCp, Op)   fused depthwise*pointwise weight (resident across grid)
    b_ref: (1, Op)     fused bias (f32)
    o_ref: (TM, Op)    output rows
    """
    acc = jnp.dot(x_ref[...], w_ref[...], preferred_element_type=jnp.float32)
    o_ref[...] = (acc + b_ref[...].astype(jnp.float32)).astype(o_ref.dtype)


def depthwise_separable_conv1d(x_ncl, dw_w, dw_b, pw_w, pw_b,
                               *, kernel_size, stride, dilation,
                               row_tile=512):
    """x_ncl: (N, C, L)   dw_w: (C, 1, K)   dw_b: (C,)   pw_w: (O, C, 1)   pw_b: (O,)
    Returns (N, O, L_out), matching nn.Conv1d(groups=C) -> nn.Conv1d(k=1)."""
    n, c, l = x_ncl.shape
    o = pw_w.shape[0]
    k = kernel_size
    l_out = (l - dilation * (k - 1) - 1) // stride + 1
    assert l_out > 0, "input too short for this kernel/stride/dilation"

    dtype = x_ncl.dtype

    # ---------------- wrapper-side layout prep (glue) ----------------
    x_nlc = jnp.transpose(x_ncl, (0, 2, 1))                    # (N, L, C) channels-last

    # im2col -> (N, L_out, K*C), column index = kk*C + cc
    if stride == k and dilation == 1:
        # non-overlapping contiguous windows: free reshape
        x2 = x_nlc[:, :l_out * k, :].reshape(n, l_out, k * c)
    else:
        cols = [
            lax.slice_in_dim(
                x_nlc, kk * dilation,
                kk * dilation + (l_out - 1) * stride + 1,
                stride=stride, axis=1)                         # (N, L_out, C)
            for kk in range(k)
        ]
        x2 = jnp.stack(cols, axis=2).reshape(n, l_out, k * c)

    rows = n * l_out
    x2 = x2.reshape(rows, k * c)                               # fold batch into rows

    # Fused weight / bias (built in f32 for accuracy).
    dw2 = dw_w[:, 0, :].astype(jnp.float32)                    # (C, K)
    pw2 = pw_w[:, :, 0].astype(jnp.float32)                    # (O, C)
    wf = (dw2.T[:, :, None] * pw2.T[None, :, :]).reshape(k * c, o)   # (K*C, O)
    bf = dw_b.astype(jnp.float32) @ pw2.T + pw_b.astype(jnp.float32)  # (O,)

    # MXU operand dtype: keep bf16 operands bf16 (f32 accumulate); otherwise f32.
    op_dtype = jnp.bfloat16 if dtype == jnp.bfloat16 else jnp.float32
    x2 = x2.astype(op_dtype)
    wf = wf.astype(op_dtype)

    # Lane-dense padding (multiples of 128) and row-tile padding.
    kc = k * c
    kc_pad = _round_up(kc, 128)
    o_pad = _round_up(o, 128)
    tm = row_tile if rows > row_tile else max(8, _round_up(rows, 8))
    rows_pad = _round_up(rows, tm)

    x2p = jnp.pad(x2, ((0, rows_pad - rows), (0, kc_pad - kc)))
    wfp = jnp.pad(wf, ((0, kc_pad - kc), (0, o_pad - o)))
    bfp = jnp.pad(bf, (0, o_pad - o)).reshape(1, o_pad)

    grid = (rows_pad // tm,)

    out_padded = pl.pallas_call(
        _fused_matmul_kernel,
        out_shape=jax.ShapeDtypeStruct((rows_pad, o_pad), dtype),
        grid_spec=pl.GridSpec(
            grid=grid,
            in_specs=[
                pl.BlockSpec((tm, kc_pad), lambda i: (i, 0)),
                pl.BlockSpec((kc_pad, o_pad), lambda i: (0, 0)),   # weights resident
                pl.BlockSpec((1, o_pad), lambda i: (0, 0)),        # bias resident
            ],
            out_specs=pl.BlockSpec((tm, o_pad), lambda i: (i, 0)),
        ),
        compiler_params=pltpu.CompilerParams(
            dimension_semantics=("parallel",),
        ),
    )(x2p, wfp, bfp)

    out = out_padded[:rows, :o].reshape(n, l_out, o)           # strip padding
    return jnp.transpose(out, (0, 2, 1))                       # back to (N, O, L_out)


def _reference(x_ncl, dw_w, dw_b, pw_w, pw_b, *, kernel_size, stride, dilation):
    """Pure-JAX reference mirroring nn.Conv1d semantics."""
    c = x_ncl.shape[1]
    dn = ("NCH", "OIH", "NCH")
    y = lax.conv_general_dilated(
        x_ncl, dw_w, window_strides=(stride,), padding="VALID",
        rhs_dilation=(dilation,), dimension_numbers=dn,
        feature_group_count=c)
    y = y + dw_b[None, :, None]
    z = lax.conv_general_dilated(
        y, pw_w, window_strides=(1,), padding="VALID",
        dimension_numbers=dn)
    return z + pw_b[None, :, None]


def _make_params(key, in_channels, out_channels, kernel_size):
    k1, k2, k3, k4 = jax.random.split(key, 4)
    bound_dw = 1.0 / (1 * kernel_size) ** 0.5
    dw_w = jax.random.uniform(k1, (in_channels, 1, kernel_size),
                              minval=-bound_dw, maxval=bound_dw, dtype=jnp.float32)
    dw_b = jax.random.uniform(k2, (in_channels,),
                              minval=-bound_dw, maxval=bound_dw, dtype=jnp.float32)
    bound_pw = 1.0 / (in_channels * 1) ** 0.5
    pw_w = jax.random.uniform(k3, (out_channels, in_channels, 1),
                              minval=-bound_pw, maxval=bound_pw, dtype=jnp.float32)
    pw_b = jax.random.uniform(k4, (out_channels,),
                              minval=-bound_pw, maxval=bound_pw, dtype=jnp.float32)
    return dw_w, dw_b, pw_w, pw_b


if __name__ == "__main__":
    key = jax.random.PRNGKey(0)
    kx, kp, kp2 = jax.random.split(key, 3)

    # Module config: DepthwiseSeparableConv1d(in_channels=4, out_channels=8, kernel_size=3)
    # -> stride defaults to kernel_size (=3), dilation=1.
    in_channels, out_channels = 4, 8
    kernel_size, stride, dilation = 3, 3, 1
    batch, length = 2, 16

    x = jax.random.normal(kx, (batch, in_channels, length), dtype=jnp.float32)
    dw_w, dw_b, pw_w, pw_b = _make_params(kp, in_channels, out_channels, kernel_size)

    out = depthwise_separable_conv1d(
        x, dw_w, dw_b, pw_w, pw_b,
        kernel_size=kernel_size, stride=stride, dilation=dilation)
    out = jax.block_until_ready(out)

    ref = _reference(x, dw_w, dw_b, pw_w, pw_b,
                     kernel_size=kernel_size, stride=stride, dilation=dilation)
    assert out.shape == ref.shape, (out.shape, ref.shape)
    assert jnp.allclose(out, ref, atol=1e-5, rtol=1e-5), "mismatch vs reference (default cfg)"

    # Extra check: exercise the general im2col path (stride != kernel_size, dilation > 1).
    stride2, dilation2 = 2, 2
    dw_w2, dw_b2, pw_w2, pw_b2 = _make_params(kp2, in_channels, out_channels, kernel_size)
    out2 = depthwise_separable_conv1d(
        x, dw_w2, dw_b2, pw_w2, pw_b2,
        kernel_size=kernel_size, stride=stride2, dilation=dilation2)
    out2 = jax.block_until_ready(out2)
    ref2 = _reference(x, dw_w2, dw_b2, pw_w2, pw_b2,
                      kernel_size=kernel_size, stride=stride2, dilation=dilation2)
    assert out2.shape == ref2.shape, (out2.shape, ref2.shape)
    assert jnp.allclose(out2, ref2, atol=1e-5, rtol=1e-5), "mismatch vs reference (general cfg)"

    print("KERNEL_OK")
</pallas_src>

<mosaic_0001>
module attributes {stable_mosaic.version = 11 : i64} {
  func.func @_fused_matmul_kernel(%arg0: i32, %arg1: memref<16x128xf32, #tpu.memory_space<vmem>>, %arg2: memref<128x128xf32, #tpu.memory_space<vmem>>, %arg3: memref<1x128xf32, #tpu.memory_space<vmem>>, %arg4: memref<16x128xf32, #tpu.memory_space<vmem>>) attributes {dimension_semantics = [#tpu.dimension_semantics<parallel>], iteration_bounds = array<i64: 1>, scalar_prefetch = 0 : i64, scratch_operands = 0 : i64, tpu.core_type = #tpu.core_type<tc>, window_params = [{transform_indices = @transform_0, window_bounds = array<i64: 16, 128>}, {pipeline_mode = #tpu.pipeline_mode<synchronous>, transform_indices = @transform_1, window_bounds = array<i64: 128, 128>}, {pipeline_mode = #tpu.pipeline_mode<synchronous>, transform_indices = @transform_2, window_bounds = array<i64: 1, 128>}, {transform_indices = @transform_3, window_bounds = array<i64: 16, 128>}]} {
    %c0 = arith.constant 0 : index
    %c0_0 = arith.constant 0 : index
    %0 = vector.load %arg1[%c0, %c0_0] : memref<16x128xf32, #tpu.memory_space<vmem>>, vector<16x128xf32>
    %c0_1 = arith.constant 0 : index
    %c0_2 = arith.constant 0 : index
    %1 = vector.load %arg2[%c0_1, %c0_2] : memref<128x128xf32, #tpu.memory_space<vmem>>, vector<128x128xf32>
    %cst = arith.constant dense<0.000000e+00> : vector<16x128xf32>
    %2 = tpu.matmul %0, %1, %cst {dimension_numbers = #tpu.dot_dimension_numbers<[1], [0], [0], [1], [0, 0, 1, 1], [], []>} : vector<16x128xf32>, vector<128x128xf32>, vector<16x128xf32> -> vector<16x128xf32>
    %c0_3 = arith.constant 0 : index
    %c0_4 = arith.constant 0 : index
    %3 = vector.load %arg3[%c0_3, %c0_4] : memref<1x128xf32, #tpu.memory_space<vmem>>, vector<1x128xf32>
    %4 = vector.broadcast %3 : vector<1x128xf32> to vector<16x128xf32>
    %5 = arith.addf %2, %4 : vector<16x128xf32>
    %c0_5 = arith.constant 0 : index
    %c0_6 = arith.constant 0 : index
    %6 = vector.load %arg4[%c0_5, %c0_6] : memref<16x128xf32, #tpu.memory_space<vmem>>, vector<16x128xf32>
    tpu.vector_store %arg4[%c0_5, %c0_6], %5 {strides = array<i32>} : memref<16x128xf32, #tpu.memory_space<vmem>>, vector<16x128xf32>,
    return
  }
  func.func @transform_0(%arg0: i32) -> (i32, i32) {
    %c0_i32 = arith.constant 0 : i32
    %c0_i32_0 = arith.constant 0 : i32
    return %arg0, %c0_i32 : i32, i32
  }
  func.func @transform_1(%arg0: i32) -> (i32, i32) {
    %c0_i32 = arith.constant 0 : i32
    %c0_i32_0 = arith.constant 0 : i32
    %c0_i32_1 = arith.constant 0 : i32
    return %c0_i32, %c0_i32_0 : i32, i32
  }
  func.func @transform_2(%arg0: i32) -> (i32, i32) {
    %c0_i32 = arith.constant 0 : i32
    %c0_i32_0 = arith.constant 0 : i32
    %c0_i32_1 = arith.constant 0 : i32
    return %c0_i32, %c0_i32_0 : i32, i32
  }
  func.func @transform_3(%arg0: i32) -> (i32, i32) {
    %c0_i32 = arith.constant 0 : i32
    %c0_i32_0 = arith.constant 0 : i32
    return %arg0, %c0_i32 : i32, i32
  }
}

</mosaic_0001>

<llo_original>
// kernel: tpu_custom_call.1
$region0: #{tpu_custom_call.1}
  #allocation0 [shape = 'u32[]', space=smem, size = 0x4, offset = 0x4, fixed_abs, tag = 'smem constant byte address 0x4 - core index']
  #allocation1 [shape = 'u32[144,128]{1,0:T(1,128)}', space=vmem, size = 0x12000, scoped, tag = 'internal scratch']
  %s0 = inlined_call_operand.hbm [shape: f32[16,128], index: 0, kind: input, shape index: {}]
  %s1 = inlined_call_operand.hbm [shape: f32[128,128], index: 1, kind: input, shape index: {}]
  %s2 = inlined_call_operand.vmem [shape: f32[1,128], index: 2, kind: input, shape index: {}]
  %s3 = inlined_call_operand.hbm [shape: f32[16,128], index: 3, kind: output, shape index: {}]
  %s4 = sld [smem:[#allocation0]]
  $region30: #{tpu_custom_call.1} parent=0
    _
  %s6 = ssub.s32 1, %s4
  %s7 = scalar_select 0, %s6, %s4
  $region1: #{tpu_custom_call.1} parent=0
    #allocation2 [shape = 'u8[8192]{0}', space=vmem, size = 0x2000, scoped, tag = 'input window, operand 0, single buffered']
    #allocation3 [shape = 's32[1]{0}', space=sflag, size = 0x4, scoped, tag = 'scoped memory for tpu_custom_call.1']
    #allocation4 [shape = 's32[1]{0}', space=sflag, size = 0x4, scoped, tag = 'scoped memory for tpu_custom_call.1']
    #allocation5 [shape = 'u8[65536]{0}', space=vmem, size = 0x10000, scoped, tag = 'input window, operand 1, single buffered']
    #allocation6 [shape = 's32[1]{0}', space=sflag, size = 0x4, scoped, tag = 'scoped memory for tpu_custom_call.1']
    #allocation7 [shape = 'u8[8192]{0}', space=vmem, size = 0x2000, scoped, tag = 'output window, operand 0, single buffered']
    %8 = vsyncpa [#allocation3], 0
    %9 = vsyncpa [#allocation6], 0
    %10 = vsyncpa [#allocation4], 0
    // Predicated region
    $region2: #{tpu_custom_call.1} parent=1 // pred_check
      _
    $region3: #{tpu_custom_call.1} parent=1 // pred_check_branch
      %12 = sbr.rel (0) target = $region5
    $region4: #{tpu_custom_call.1} parent=1 // pred_region
      %s14 = ssub.s32 256, 256
      %15 = vsyncadd [#allocation3], %s14
      %s16 = sshll.u32 [#allocation2], 4
      %s17 = int_to_ptr.vmem [resolvable:$true] %s16
      %22 = dma.hbm_to_vmem [thread:$0]  %s0, 256, %s17, [#allocation3], 128, 128, 8
    $region5: #{tpu_custom_call.1} parent=1 // pred_fallthru
      _
    // Predicated region
    $region6: #{tpu_custom_call.1} parent=1 // pred_check
      _
    $region7: #{tpu_custom_call.1} parent=1 // pred_check_branch
      %24 = sbr.rel (0) target = $region9
    $region8: #{tpu_custom_call.1} parent=1 // pred_region
      %s26 = ssub.s32 2048, 2048
      %27 = vsyncadd [#allocation6], %s26
      %s28 = sshll.u32 [#allocation5], 4
      %s29 = int_to_ptr.vmem [resolvable:$true] %s28
      %34 = dma.hbm_to_vmem [thread:$0]  %s1, 2048, %s29, [#allocation6], 128, 128, 8
    $region9: #{tpu_custom_call.1} parent=1 // pred_fallthru
      _
    // Predicated region
    $region10: #{tpu_custom_call.1} parent=1 // pred_check
      _
    $region11: #{tpu_custom_call.1} parent=1 // pred_check_branch
      %36 = sbr.rel (0) target = $region13
    $region12: #{tpu_custom_call.1} parent=1 // pred_region
      _
    $region13: #{tpu_custom_call.1} parent=1 // pred_fallthru
      _
    // Predicated region
    $region14: #{tpu_custom_call.1} parent=1 // pred_check
      _
    $region15: #{tpu_custom_call.1} parent=1 // pred_check_branch
      %38 = sbr.rel (0) target = $region17
    $region16: #{tpu_custom_call.1} parent=1 // pred_region
      %39 = dma.done [#allocation3], 256
    $region17: #{tpu_custom_call.1} parent=1 // pred_fallthru
      _
    // Predicated region
    $region18: #{tpu_custom_call.1} parent=1 // pred_check
      _
    $region19: #{tpu_custom_call.1} parent=1 // pred_check_branch
      %41 = sbr.rel (0) target = $region21
    $region20: #{tpu_custom_call.1} parent=1 // pred_region
      %42 = dma.done [#allocation6], 2048
    $region21: #{tpu_custom_call.1} parent=1 // pred_fallthru
      _
    %v43 = vld [vmem:[#allocation2] sm:$0xff]
    %v44 = vld [vmem:[#allocation2 + $0x8] sm:$0xff]
    %v45 = vld [vmem:[#allocation5] sm:$0xff]
    %v46 = vld [vmem:[#allocation5 + $0x8] sm:$0xff]
    %v47 = vld [vmem:[#allocation5 + $0x10] sm:$0xff]
    %v48 = vld [vmem:[#allocation5 + $0x18] sm:$0xff]
    %v49 = vld [vmem:[#allocation5 + $0x20] sm:$0xff]
    %v50 = vld [vmem:[#allocation5 + $0x28] sm:$0xff]
    %v51 = vld [vmem:[#allocation5 + $0x30] sm:$0xff]
    %v52 = vld [vmem:[#allocation5 + $0x38] sm:$0xff]
    %v53 = vld [vmem:[#allocation5 + $0x40] sm:$0xff]
    %v54 = vld [vmem:[#allocation5 + $0x48] sm:$0xff]
    %v55 = vld [vmem:[#allocation5 + $0x50] sm:$0xff]
    %v56 = vld [vmem:[#allocation5 + $0x58] sm:$0xff]
    %v57 = vld [vmem:[#allocation5 + $0x60] sm:$0xff]
    %v58 = vld [vmem:[#allocation5 + $0x68] sm:$0xff]
    %v59 = vld [vmem:[#allocation5 + $0x70] sm:$0xff]
    %v60 = vld [vmem:[#allocation5 + $0x78] sm:$0xff]
    %v61 = vld [vmem:[%s2] sm:$0x1]
    %v63 = vlaneseq
    %v64 = vshrl.u32 %v63, 7
    %v65 = vsub.s32 0, %v64
    %v66 = vrot.slane %v61, %v65
    %68 = vmatprep.subr.mxu0 0.0
    %69 = vmatpush1.msra.mxu0 %v60
    %70 = vmatprep.subr.mxu0 0.0
    %71 = vmatpush1.msra.mxu0 %v59
    %72 = vmatprep.subr.mxu0 0.0
    %73 = vmatpush1.msra.mxu0 %v58
    %74 = vmatprep.subr.mxu0 0.0
    %75 = vmatpush1.msra.mxu0 %v57
    %76 = vmatprep.subr.mxu0 0.0
    %77 = vmatpush1.msra.mxu0 %v56
    %78 = vmatprep.subr.mxu0 0.0
    %79 = vmatpush1.msra.mxu0 %v55
    %80 = vmatprep.subr.mxu0 0.0
    %81 = vmatpush1.msra.mxu0 %v54
    %82 = vmatprep.subr.mxu0 0.0
    %83 = vmatpush1.msra.mxu0 %v53
    %84 = vmatprep.subr.mxu0 0.0
    %85 = vmatpush1.msra.mxu0 %v52
    %86 = vmatprep.subr.mxu0 0.0
    %87 = vmatpush1.msra.mxu0 %v51
    %88 = vmatprep.subr.mxu0 0.0
    %89 = vmatpush1.msra.mxu0 %v50
    %90 = vmatprep.subr.mxu0 0.0
    %91 = vmatpush1.msra.mxu0 %v49
    %92 = vmatprep.subr.mxu0 0.0
    %93 = vmatpush1.msra.mxu0 %v48
    %94 = vmatprep.subr.mxu0 0.0
    %95 = vmatpush1.msra.mxu0 %v47
    %96 = vmatprep.subr.mxu0 0.0
    %97 = vmatpush1.msra.mxu0 %v46
    %98 = vmatprep.subr.mxu0 0.0
    %99 = vmatpush1.msra.mxu0 %v45
    %100 = vmatprep.subr.mxu0 0.0
    %101 = vmatpush2.msra.mxu0 0.0
    %102 = vmatprep.subr.mxu0 0.0
    %103 = vmatpush2.msra.mxu0 0.0
    %104 = vmatprep.subr.mxu0 0.0
    %105 = vmatpush2.msra.mxu0 0.0
    %106 = vmatprep.subr.mxu0 0.0
    %107 = vmatpush2.msra.mxu0 0.0
    %108 = vmatprep.subr.mxu0 0.0
    %109 = vmatpush2.msra.mxu0 0.0
    %110 = vmatprep.subr.mxu0 0.0
    %111 = vmatpush2.msra.mxu0 0.0
    %112 = vmatprep.subr.mxu0 0.0
    %113 = vmatpush2.msra.mxu0 0.0
    %114 = vmatprep.subr.mxu0 0.0
    %115 = vmatpush2.msra.mxu0 0.0
    %116 = vmatprep.subr.mxu0 0.0
    %117 = vmatpush2.msra.mxu0 0.0
    %118 = vmatprep.subr.mxu0 0.0
    %119 = vmatpush2.msra.mxu0 0.0
    %120 = vmatprep.subr.mxu0 0.0
    %121 = vmatpush2.msra.mxu0 0.0
    %122 = vmatprep.subr.mxu0 0.0
    %123 = vmatpush2.msra.mxu0 0.0
    %124 = vmatprep.subr.mxu0 0.0
    %125 = vmatpush2.msra.mxu0 0.0
    %126 = vmatprep.subr.mxu0 0.0
    %127 = vmatpush2.msra.mxu0 0.0
    %128 = vmatprep.subr.mxu0 0.0
    %129 = vmatpush2.msra.mxu0 0.0
    %130 = vmatprep.subr.mxu0 0.0
    %131 = vmatpush2.msra.mxu0 0.0
    %132 = vmatprep.mubr.f32.mxu0 0.0
    %133 = vmatmul.mubr.f32.gmra.mxu0 %v43
    %v134 = vpop.f32.mrf.mxu0
    %v135 = vadd.f32 %v66, %v134
    %v136 = vpop.f32.mrf.mxu0
    %137 = vmatprep.mubr.f32.mxu0 0.0
    %138 = vmatmul.mubr.f32.gmra.mxu0 %v44
    %v139 = vpop.f32.mrf.mxu0
    %v140 = vadd.f32 %v66, %v139
    %v141 = vpop.f32.mrf.mxu0
    %142 = vdwg.mxu0
    %143 = vst [vmem:[#allocation7] sm:$0xff] %v135
    %144 = vst [vmem:[#allocation7 + $0x8] sm:$0xff] %v140
    // Predicated region
    $region22: #{tpu_custom_call.1} parent=1 // pred_check
      _
    $region23: #{tpu_custom_call.1} parent=1 // pred_check_branch
      %146 = sbr.rel (0) target = $region25
    $region24: #{tpu_custom_call.1} parent=1 // pred_region
      %s148 = ssub.s32 256, 256
      %149 = vsyncadd [#allocation4], %s148
      %s150 = sshll.u32 [#allocation7], 4
      %s151 = int_to_ptr.vmem [resolvable:$true] %s150
      %156 = dma.vmem_to_hbm [thread:$0]  %s151, 256, %s3, [#allocation4], 128, 128, 8
    $region25: #{tpu_custom_call.1} parent=1 // pred_fallthru
      _
    // Predicated region
    $region26: #{tpu_custom_call.1} parent=1 // pred_check
      _
    $region27: #{tpu_custom_call.1} parent=1 // pred_check_branch
      %158 = sbr.rel (0) target = $region29
    $region28: #{tpu_custom_call.1} parent=1 // pred_region
      %159 = dma.done [#allocation4], 256
    $region29: #{tpu_custom_call.1} parent=1 // pred_fallthru
      _
    %160 = vsyncpa [#allocation3], 1
    %161 = vsyncpa [#allocation6], 1
    %162 = vsyncpa [#allocation4], 1

</llo_original>
